<compile_context>
chip_gen: v6e
topology: v6e:2x2x1
jax: 0.10.0
libtpu: 0.0.40
codegen_flags: <defaults>
</compile_context>

<pallas_src>
import functools

import jax
import jax.numpy as jnp
from jax.experimental import pallas as pl
from jax.experimental.pallas import tpu as pltpu

_LANES = 128


def _dice_counts_kernel(lg_ref, tg_ref, out_ref, *, num_classes, hw, need_mask):
    # lg_ref : (1, C, TR, 128) float  logits block
    # tg_ref : (1, TR, 128)    int32  target block
    # out_ref: (1, K, 3)       float32 accumulator (resident over row-tiles)
    C = lg_ref.shape[1]
    TR = lg_ref.shape[2]
    L = lg_ref.shape[3]

    # Channel argmax, first-occurrence tie-break (matches torch.argmax).
    best_val = lg_ref[0, 0]                                # (TR, L)
    best_idx = jnp.zeros(best_val.shape, jnp.int32)
    for c in range(1, C):
        v = lg_ref[0, c]
        gt = v > best_val
        best_val = jnp.where(gt, v, best_val)
        best_idx = jnp.where(gt, jnp.int32(c), best_idx)

    tgt = tg_ref[0]                                        # (TR, L) int32

    if need_mask:
        # Pixels past H*W (lane padding and/or ragged last row-tile whose
        # out-of-bounds block contents are undefined) get sentinel class ids
        # that match no real class: 2 selects total instead of 2*K AND-masks.
        t = pl.program_id(1)
        row = jax.lax.broadcasted_iota(jnp.int32, (TR, L), 0)
        lane = jax.lax.broadcasted_iota(jnp.int32, (TR, L), 1)
        pix = (t * TR + row) * L + lane
        valid = pix < hw                                   # (TR, L) bool
        best_idx = jnp.where(valid, best_idx, -1)
        tgt = jnp.where(valid, tgt, -2)

    eq = best_idx == tgt                                   # pred == target

    def _rsum(x):                                          # (TR, L) -> (1, 1)
        s = jnp.sum(x, axis=1, keepdims=True)              # lane reduce (XLU)
        return jnp.sum(s, axis=0, keepdims=True)           # sublane reduce

    rows_out = []
    for c in range(num_classes):
        t_f = (tgt == c).astype(jnp.float32)
        p_f = (best_idx == c).astype(jnp.float32)
        i_f = jnp.where(eq, t_f, 0.0)                      # pred==c & tgt==c
        rows_out.append(
            jnp.concatenate([_rsum(i_f), _rsum(p_f), _rsum(t_f)], axis=1))
    counts = jnp.concatenate(rows_out, axis=0)             # (K, 3)

    @pl.when(pl.program_id(1) == 0)
    def _():
        out_ref[...] = jnp.zeros_like(out_ref)

    out_ref[...] += counts[None]


def dice_loss(logits, target, num_classes=2, eps=1e-6, tile_rows=512,
              vmem_budget_bytes=12 * 1024 * 1024):
    """Pallas implementation of DiceLoss.forward(output=logits, target)."""
    N, C, H, W = logits.shape
    HW = H * W
    rows = pl.cdiv(HW, _LANES)
    hw_pad = rows * _LANES

    # Free views: no NCHW -> CNHW transpose copy, no dtype upcast of the
    # dominant (logits) input.
    lg = logits
    if not jnp.issubdtype(lg.dtype, jnp.floating):
        lg = lg.astype(jnp.float32)
    lg = lg.reshape(N, C, HW)
    tg = target.astype(jnp.int32).reshape(N, HW)
    if hw_pad != HW:
        # Only copies when H*W is not a multiple of 128; padded pixels are
        # masked out (sentinel class ids) inside the kernel.
        lg = jnp.pad(lg, ((0, 0), (0, 0), (0, hw_pad - HW)))
        tg = jnp.pad(tg, ((0, 0), (0, hw_pad - HW)), constant_values=-1)
    lg = lg.reshape(N, C, rows, _LANES)
    tg = tg.reshape(N, rows, _LANES)

    # Row-tile size: as big as possible while the double-buffered input
    # blocks stay inside the VMEM budget; rounded to the dtype's native
    # sublane tile (8 for f32, 16 for bf16, 32 for 1-byte types).
    itemsize = lg.dtype.itemsize
    sub = max(8, 32 // itemsize)
    per_row_bytes = _LANES * (C * itemsize + 4)            # logits + target
    tr_cap = max(sub, vmem_budget_bytes // (2 * per_row_bytes))
    tr_max = min(tile_rows, tr_cap)
    if rows <= tr_max:
        TR = rows                                          # full extent block
    else:
        TR = max(sub, (tr_max // sub) * sub)
    n_tiles = pl.cdiv(rows, TR)
    need_mask = (n_tiles * TR * _LANES != HW)

    counts = pl.pallas_call(
        functools.partial(_dice_counts_kernel, num_classes=num_classes,
                          hw=HW, need_mask=need_mask),
        out_shape=jax.ShapeDtypeStruct((N, num_classes, 3), jnp.float32),
        grid_spec=pltpu.PrefetchScalarGridSpec(
            num_scalar_prefetch=0,
            grid=(N, n_tiles),
            in_specs=[
                pl.BlockSpec((1, C, TR, _LANES), lambda n, t: (n, 0, t, 0)),
                pl.BlockSpec((1, TR, _LANES), lambda n, t: (n, t, 0)),
            ],
            out_specs=pl.BlockSpec((1, num_classes, 3), lambda n, t: (n, 0, 0)),
        ),
        compiler_params=pltpu.CompilerParams(
            dimension_semantics=("parallel", "arbitrary")),
    )(lg, tg)

    # Tiny scalar epilogue in plain JAX (matches the PyTorch module, which
    # flattens the whole batch into a single sample before the dice ratio).
    totals = jnp.sum(counts, axis=0)            # (K, 3) over the batch axis
    inter = totals[:, 0]
    pred_cnt = totals[:, 1]
    tgt_cnt = totals[:, 2]
    union = pred_cnt + tgt_cnt + eps
    return jnp.mean(1.0 - (2.0 * inter + eps) / union)


def _dice_loss_ref(logits, target, num_classes=2, eps=1e-6):
    """Pure-JAX reference mirroring the PyTorch module exactly."""
    pred = jnp.argmax(logits, axis=1).reshape(1, -1)
    tgt = target.reshape(1, -1).astype(jnp.float32)
    loss = 0.0
    for c in range(num_classes):
        po = (pred == c)
        to = (tgt == c)
        inter = jnp.sum(po & to, axis=1).astype(jnp.float32)
        union = (jnp.sum(po, axis=1) + jnp.sum(to, axis=1)).astype(jnp.float32) + eps
        loss += jnp.mean(1.0 - (2.0 * inter + eps) / union)
    return loss / num_classes


if __name__ == "__main__":
    key = jax.random.PRNGKey(0)
    k1, k2, k3, k4, k5, k6 = jax.random.split(key, 6)

    # Primary small test (lane-aligned spatial size, no masking path).
    num_classes = 4
    N, H, W = 2, 16, 16
    logits = jax.random.normal(k1, (N, num_classes, H, W), dtype=jnp.float32)
    target = jax.random.randint(k2, (N, H, W), 0, num_classes, dtype=jnp.int32)
    loss = dice_loss(logits, target, num_classes=num_classes)
    jax.block_until_ready(loss)
    ref = _dice_loss_ref(logits, target, num_classes=num_classes)
    assert jnp.allclose(loss, ref, atol=1e-5, rtol=1e-5), (loss, ref)

    # Ragged row-tiles (rows % TR != 0): exercises the in-kernel tail mask.
    logits2 = jax.random.normal(k3, (2, 3, 48, 48), dtype=jnp.float32)
    target2 = jax.random.randint(k4, (2, 48, 48), 0, 3, dtype=jnp.int32)
    loss2 = dice_loss(logits2, target2, num_classes=3, tile_rows=8)
    ref2 = _dice_loss_ref(logits2, target2, num_classes=3)
    assert jnp.allclose(loss2, ref2, atol=1e-5, rtol=1e-5), (loss2, ref2)

    # Non-lane-aligned spatial size (H*W % 128 != 0): pad + mask path.
    logits3 = jax.random.normal(k5, (1, 2, 36, 36), dtype=jnp.float32)
    target3 = jax.random.randint(k6, (1, 36, 36), 0, 2, dtype=jnp.int32)
    loss3 = dice_loss(logits3, target3, num_classes=2)
    ref3 = _dice_loss_ref(logits3, target3, num_classes=2)
    assert jnp.allclose(loss3, ref3, atol=1e-5, rtol=1e-5), (loss3, ref3)

    jax.block_until_ready((loss, loss2, loss3))
    print("KERNEL_OK")
</pallas_src>

<mosaic_0001>
module attributes {stable_mosaic.version = 11 : i64} {
  func.func @_dice_counts_kernel(%arg0: i32, %arg1: i32, %arg2: memref<1x4x2x128xf32, #tpu.memory_space<vmem>>, %arg3: memref<1x2x128xi32, #tpu.memory_space<vmem>>, %arg4: memref<1x4x3xf32, #tpu.memory_space<vmem>>) attributes {dimension_semantics = [#tpu.dimension_semantics<parallel>, #tpu.dimension_semantics<arbitrary>], iteration_bounds = array<i64: 2, 1>, scalar_prefetch = 0 : i64, scratch_operands = 0 : i64, tpu.core_type = #tpu.core_type<tc>, window_params = [{transform_indices = @transform_0, window_bounds = array<i64: 1, 4, 2, 128>}, {transform_indices = @transform_1, window_bounds = array<i64: 1, 2, 128>}, {transform_indices = @transform_2, window_bounds = array<i64: 1, 4, 3>}]} {
    %c0 = arith.constant 0 : index
    %c0_0 = arith.constant 0 : index
    %c0_1 = arith.constant 0 : index
    %c0_2 = arith.constant 0 : index
    %0 = vector.load %arg2[%c0, %c0_0, %c0_1, %c0_2] : memref<1x4x2x128xf32, #tpu.memory_space<vmem>>, vector<1x1x2x128xf32>
    %1 = vector.shape_cast %0 : vector<1x1x2x128xf32> to vector<2x128xf32>
    %c0_i32 = arith.constant 0 : i32
    %2 = vector.broadcast %c0_i32 : i32 to vector<2x128xi32>
    %c0_3 = arith.constant 0 : index
    %c1 = arith.constant 1 : index
    %c0_4 = arith.constant 0 : index
    %c0_5 = arith.constant 0 : index
    %3 = vector.load %arg2[%c0_3, %c1, %c0_4, %c0_5] : memref<1x4x2x128xf32, #tpu.memory_space<vmem>>, vector<1x1x2x128xf32>
    %4 = vector.shape_cast %3 : vector<1x1x2x128xf32> to vector<2x128xf32>
    %5 = arith.cmpf ogt, %4, %1 : vector<2x128xf32>
    %6 = arith.select %5, %4, %1 : vector<2x128xi1>, vector<2x128xf32>
    %c1_i32 = arith.constant 1 : i32
    %7 = vector.broadcast %c1_i32 : i32 to vector<2x128xi32>
    %8 = arith.select %5, %7, %2 : vector<2x128xi1>, vector<2x128xi32>
    %c0_6 = arith.constant 0 : index
    %c2 = arith.constant 2 : index
    %c0_7 = arith.constant 0 : index
    %c0_8 = arith.constant 0 : index
    %9 = vector.load %arg2[%c0_6, %c2, %c0_7, %c0_8] : memref<1x4x2x128xf32, #tpu.memory_space<vmem>>, vector<1x1x2x128xf32>
    %10 = vector.shape_cast %9 : vector<1x1x2x128xf32> to vector<2x128xf32>
    %11 = arith.cmpf ogt, %10, %6 : vector<2x128xf32>
    %12 = arith.select %11, %10, %6 : vector<2x128xi1>, vector<2x128xf32>
    %c2_i32 = arith.constant 2 : i32
    %13 = vector.broadcast %c2_i32 : i32 to vector<2x128xi32>
    %14 = arith.select %11, %13, %8 : vector<2x128xi1>, vector<2x128xi32>
    %c0_9 = arith.constant 0 : index
    %c3 = arith.constant 3 : index
    %c0_10 = arith.constant 0 : index
    %c0_11 = arith.constant 0 : index
    %15 = vector.load %arg2[%c0_9, %c3, %c0_10, %c0_11] : memref<1x4x2x128xf32, #tpu.memory_space<vmem>>, vector<1x1x2x128xf32>
    %16 = vector.shape_cast %15 : vector<1x1x2x128xf32> to vector<2x128xf32>
    %17 = arith.cmpf ogt, %16, %12 : vector<2x128xf32>
    %c3_i32 = arith.constant 3 : i32
    %18 = vector.broadcast %c3_i32 : i32 to vector<2x128xi32>
    %19 = arith.select %17, %18, %14 : vector<2x128xi1>, vector<2x128xi32>
    %c0_12 = arith.constant 0 : index
    %c0_13 = arith.constant 0 : index
    %c0_14 = arith.constant 0 : index
    %20 = vector.load %arg3[%c0_12, %c0_13, %c0_14] : memref<1x2x128xi32, #tpu.memory_space<vmem>>, vector<1x2x128xi32>
    %21 = vector.shape_cast %20 : vector<1x2x128xi32> to vector<2x128xi32>
    %22 = arith.cmpi eq, %19, %21 : vector<2x128xi32>
    %c0_i32_15 = arith.constant 0 : i32
    %23 = vector.broadcast %c0_i32_15 : i32 to vector<2x128xi32>
    %24 = arith.cmpi eq, %21, %23 : vector<2x128xi32>
    %25 = arith.extui %24 : vector<2x128xi1> to vector<2x128xi32>
    %26 = arith.sitofp %25 : vector<2x128xi32> to vector<2x128xf32>
    %c0_i32_16 = arith.constant 0 : i32
    %27 = vector.broadcast %c0_i32_16 : i32 to vector<2x128xi32>
    %28 = arith.cmpi eq, %19, %27 : vector<2x128xi32>
    %29 = arith.extui %28 : vector<2x128xi1> to vector<2x128xi32>
    %30 = arith.sitofp %29 : vector<2x128xi32> to vector<2x128xf32>
    %cst = arith.constant 0.000000e+00 : f32
    %31 = vector.broadcast %cst : f32 to vector<2x128xf32>
    %32 = arith.select %22, %26, %31 : vector<2x128xi1>, vector<2x128xf32>
    %cst_17 = arith.constant dense<0.000000e+00> : vector<2xf32>
    %33 = vector.multi_reduction <add>, %32, %cst_17 [1] : vector<2x128xf32> to vector<2xf32>
    %34 = vector.shape_cast %33 : vector<2xf32> to vector<2x1xf32>
    %cst_18 = arith.constant dense<0.000000e+00> : vector<1xf32>
    %35 = vector.multi_reduction <add>, %34, %cst_18 [0] : vector<2x1xf32> to vector<1xf32>
    %36 = vector.shape_cast %35 : vector<1xf32> to vector<1x1xf32>
    %cst_19 = arith.constant dense<0.000000e+00> : vector<2xf32>
    %37 = vector.multi_reduction <add>, %30, %cst_19 [1] : vector<2x128xf32> to vector<2xf32>
    %38 = vector.shape_cast %37 : vector<2xf32> to vector<2x1xf32>
    %cst_20 = arith.constant dense<0.000000e+00> : vector<1xf32>
    %39 = vector.multi_reduction <add>, %38, %cst_20 [0] : vector<2x1xf32> to vector<1xf32>
    %40 = vector.shape_cast %39 : vector<1xf32> to vector<1x1xf32>
    %cst_21 = arith.constant dense<0.000000e+00> : vector<2xf32>
    %41 = vector.multi_reduction <add>, %26, %cst_21 [1] : vector<2x128xf32> to vector<2xf32>
    %42 = vector.shape_cast %41 : vector<2xf32> to vector<2x1xf32>
    %cst_22 = arith.constant dense<0.000000e+00> : vector<1xf32>
    %43 = vector.multi_reduction <add>, %42, %cst_22 [0] : vector<2x1xf32> to vector<1xf32>
    %44 = vector.shape_cast %43 : vector<1xf32> to vector<1x1xf32>
    %45 = tpu.concatenate %36, %40, %44 in 1 : vector<1x1xf32>, vector<1x1xf32>, vector<1x1xf32> -> vector<1x3xf32>
    %c1_i32_23 = arith.constant 1 : i32
    %46 = vector.broadcast %c1_i32_23 : i32 to vector<2x128xi32>
    %47 = arith.cmpi eq, %21, %46 : vector<2x128xi32>
    %48 = arith.extui %47 : vector<2x128xi1> to vector<2x128xi32>
    %49 = arith.sitofp %48 : vector<2x128xi32> to vector<2x128xf32>
    %c1_i32_24 = arith.constant 1 : i32
    %50 = vector.broadcast %c1_i32_24 : i32 to vector<2x128xi32>
    %51 = arith.cmpi eq, %19, %50 : vector<2x128xi32>
    %52 = arith.extui %51 : vector<2x128xi1> to vector<2x128xi32>
    %53 = arith.sitofp %52 : vector<2x128xi32> to vector<2x128xf32>
    %cst_25 = arith.constant 0.000000e+00 : f32
    %54 = vector.broadcast %cst_25 : f32 to vector<2x128xf32>
    %55 = arith.select %22, %49, %54 : vector<2x128xi1>, vector<2x128xf32>
    %cst_26 = arith.constant dense<0.000000e+00> : vector<2xf32>
    %56 = vector.multi_reduction <add>, %55, %cst_26 [1] : vector<2x128xf32> to vector<2xf32>
    %57 = vector.shape_cast %56 : vector<2xf32> to vector<2x1xf32>
    %cst_27 = arith.constant dense<0.000000e+00> : vector<1xf32>
    %58 = vector.multi_reduction <add>, %57, %cst_27 [0] : vector<2x1xf32> to vector<1xf32>
    %59 = vector.shape_cast %58 : vector<1xf32> to vector<1x1xf32>
    %cst_28 = arith.constant dense<0.000000e+00> : vector<2xf32>
    %60 = vector.multi_reduction <add>, %53, %cst_28 [1] : vector<2x128xf32> to vector<2xf32>
    %61 = vector.shape_cast %60 : vector<2xf32> to vector<2x1xf32>
    %cst_29 = arith.constant dense<0.000000e+00> : vector<1xf32>
    %62 = vector.multi_reduction <add>, %61, %cst_29 [0] : vector<2x1xf32> to vector<1xf32>
    %63 = vector.shape_cast %62 : vector<1xf32> to vector<1x1xf32>
    %cst_30 = arith.constant dense<0.000000e+00> : vector<2xf32>
    %64 = vector.multi_reduction <add>, %49, %cst_30 [1] : vector<2x128xf32> to vector<2xf32>
    %65 = vector.shape_cast %64 : vector<2xf32> to vector<2x1xf32>
    %cst_31 = arith.constant dense<0.000000e+00> : vector<1xf32>
    %66 = vector.multi_reduction <add>, %65, %cst_31 [0] : vector<2x1xf32> to vector<1xf32>
    %67 = vector.shape_cast %66 : vector<1xf32> to vector<1x1xf32>
    %68 = tpu.concatenate %59, %63, %67 in 1 : vector<1x1xf32>, vector<1x1xf32>, vector<1x1xf32> -> vector<1x3xf32>
    %c2_i32_32 = arith.constant 2 : i32
    %69 = vector.broadcast %c2_i32_32 : i32 to vector<2x128xi32>
    %70 = arith.cmpi eq, %21, %69 : vector<2x128xi32>
    %71 = arith.extui %70 : vector<2x128xi1> to vector<2x128xi32>
    %72 = arith.sitofp %71 : vector<2x128xi32> to vector<2x128xf32>
    %c2_i32_33 = arith.constant 2 : i32
    %73 = vector.broadcast %c2_i32_33 : i32 to vector<2x128xi32>
    %74 = arith.cmpi eq, %19, %73 : vector<2x128xi32>
    %75 = arith.extui %74 : vector<2x128xi1> to vector<2x128xi32>
    %76 = arith.sitofp %75 : vector<2x128xi32> to vector<2x128xf32>
    %cst_34 = arith.constant 0.000000e+00 : f32
    %77 = vector.broadcast %cst_34 : f32 to vector<2x128xf32>
    %78 = arith.select %22, %72, %77 : vector<2x128xi1>, vector<2x128xf32>
    %cst_35 = arith.constant dense<0.000000e+00> : vector<2xf32>
    %79 = vector.multi_reduction <add>, %78, %cst_35 [1] : vector<2x128xf32> to vector<2xf32>
    %80 = vector.shape_cast %79 : vector<2xf32> to vector<2x1xf32>
    %cst_36 = arith.constant dense<0.000000e+00> : vector<1xf32>
    %81 = vector.multi_reduction <add>, %80, %cst_36 [0] : vector<2x1xf32> to vector<1xf32>
    %82 = vector.shape_cast %81 : vector<1xf32> to vector<1x1xf32>
    %cst_37 = arith.constant dense<0.000000e+00> : vector<2xf32>
    %83 = vector.multi_reduction <add>, %76, %cst_37 [1] : vector<2x128xf32> to vector<2xf32>
    %84 = vector.shape_cast %83 : vector<2xf32> to vector<2x1xf32>
    %cst_38 = arith.constant dense<0.000000e+00> : vector<1xf32>
    %85 = vector.multi_reduction <add>, %84, %cst_38 [0] : vector<2x1xf32> to vector<1xf32>
    %86 = vector.shape_cast %85 : vector<1xf32> to vector<1x1xf32>
    %cst_39 = arith.constant dense<0.000000e+00> : vector<2xf32>
    %87 = vector.multi_reduction <add>, %72, %cst_39 [1] : vector<2x128xf32> to vector<2xf32>
    %88 = vector.shape_cast %87 : vector<2xf32> to vector<2x1xf32>
    %cst_40 = arith.constant dense<0.000000e+00> : vector<1xf32>
    %89 = vector.multi_reduction <add>, %88, %cst_40 [0] : vector<2x1xf32> to vector<1xf32>
    %90 = vector.shape_cast %89 : vector<1xf32> to vector<1x1xf32>
    %91 = tpu.concatenate %82, %86, %90 in 1 : vector<1x1xf32>, vector<1x1xf32>, vector<1x1xf32> -> vector<1x3xf32>
    %c3_i32_41 = arith.constant 3 : i32
    %92 = vector.broadcast %c3_i32_41 : i32 to vector<2x128xi32>
    %93 = arith.cmpi eq, %21, %92 : vector<2x128xi32>
    %94 = arith.extui %93 : vector<2x128xi1> to vector<2x128xi32>
    %95 = arith.sitofp %94 : vector<2x128xi32> to vector<2x128xf32>
    %c3_i32_42 = arith.constant 3 : i32
    %96 = vector.broadcast %c3_i32_42 : i32 to vector<2x128xi32>
    %97 = arith.cmpi eq, %19, %96 : vector<2x128xi32>
    %98 = arith.extui %97 : vector<2x128xi1> to vector<2x128xi32>
    %99 = arith.sitofp %98 : vector<2x128xi32> to vector<2x128xf32>
    %cst_43 = arith.constant 0.000000e+00 : f32
    %100 = vector.broadcast %cst_43 : f32 to vector<2x128xf32>
    %101 = arith.select %22, %95, %100 : vector<2x128xi1>, vector<2x128xf32>
    %cst_44 = arith.constant dense<0.000000e+00> : vector<2xf32>
    %102 = vector.multi_reduction <add>, %101, %cst_44 [1] : vector<2x128xf32> to vector<2xf32>
    %103 = vector.shape_cast %102 : vector<2xf32> to vector<2x1xf32>
    %cst_45 = arith.constant dense<0.000000e+00> : vector<1xf32>
    %104 = vector.multi_reduction <add>, %103, %cst_45 [0] : vector<2x1xf32> to vector<1xf32>
    %105 = vector.shape_cast %104 : vector<1xf32> to vector<1x1xf32>
    %cst_46 = arith.constant dense<0.000000e+00> : vector<2xf32>
    %106 = vector.multi_reduction <add>, %99, %cst_46 [1] : vector<2x128xf32> to vector<2xf32>
    %107 = vector.shape_cast %106 : vector<2xf32> to vector<2x1xf32>
    %cst_47 = arith.constant dense<0.000000e+00> : vector<1xf32>
    %108 = vector.multi_reduction <add>, %107, %cst_47 [0] : vector<2x1xf32> to vector<1xf32>
    %109 = vector.shape_cast %108 : vector<1xf32> to vector<1x1xf32>
    %cst_48 = arith.constant dense<0.000000e+00> : vector<2xf32>
    %110 = vector.multi_reduction <add>, %95, %cst_48 [1] : vector<2x128xf32> to vector<2xf32>
    %111 = vector.shape_cast %110 : vector<2xf32> to vector<2x1xf32>
    %cst_49 = arith.constant dense<0.000000e+00> : vector<1xf32>
    %112 = vector.multi_reduction <add>, %111, %cst_49 [0] : vector<2x1xf32> to vector<1xf32>
    %113 = vector.shape_cast %112 : vector<1xf32> to vector<1x1xf32>
    %114 = tpu.concatenate %105, %109, %113 in 1 : vector<1x1xf32>, vector<1x1xf32>, vector<1x1xf32> -> vector<1x3xf32>
    %115 = tpu.concatenate %45, %68, %91, %114 in 0 : vector<1x3xf32>, vector<1x3xf32>, vector<1x3xf32>, vector<1x3xf32> -> vector<4x3xf32>
    %c0_i32_50 = arith.constant 0 : i32
    %116 = arith.cmpi eq, %arg1, %c0_i32_50 : i32
    %117 = arith.extui %116 : i1 to i32
    %c0_i32_51 = arith.constant 0 : i32
    %118 = arith.cmpi ne, %117, %c0_i32_51 : i32
    scf.if %118 {
      %cst_58 = arith.constant 0.000000e+00 : f32
      %123 = vector.broadcast %cst_58 : f32 to vector<1x4x3xf32>
      %c0_59 = arith.constant 0 : index
      %c0_60 = arith.constant 0 : index
      %c0_61 = arith.constant 0 : index
      %124 = vector.load %arg4[%c0_59, %c0_60, %c0_61] : memref<1x4x3xf32, #tpu.memory_space<vmem>>, vector<1x4x3xf32>
      tpu.vector_store %arg4[%c0_59, %c0_60, %c0_61], %123 {strides = array<i32>} : memref<1x4x3xf32, #tpu.memory_space<vmem>>, vector<1x4x3xf32>,
    } else {
    }
    %c0_52 = arith.constant 0 : index
    %c0_53 = arith.constant 0 : index
    %c0_54 = arith.constant 0 : index
    %119 = vector.load %arg4[%c0_52, %c0_53, %c0_54] : memref<1x4x3xf32, #tpu.memory_space<vmem>>, vector<1x4x3xf32>
    %120 = vector.shape_cast %115 : vector<4x3xf32> to vector<1x4x3xf32>
    %121 = arith.addf %119, %120 : vector<1x4x3xf32>
    %c0_55 = arith.constant 0 : index
    %c0_56 = arith.constant 0 : index
    %c0_57 = arith.constant 0 : index
    %122 = vector.load %arg4[%c0_55, %c0_56, %c0_57] : memref<1x4x3xf32, #tpu.memory_space<vmem>>, vector<1x4x3xf32>
    tpu.vector_store %arg4[%c0_55, %c0_56, %c0_57], %121 {strides = array<i32>} : memref<1x4x3xf32, #tpu.memory_space<vmem>>, vector<1x4x3xf32>,
    return
  }
  func.func @transform_0(%arg0: i32, %arg1: i32) -> (i32, i32, i32, i32) {
    %c0_i32 = arith.constant 0 : i32
    %c0_i32_0 = arith.constant 0 : i32
    %c0_i32_1 = arith.constant 0 : i32
    return %arg0, %c0_i32, %arg1, %c0_i32_0 : i32, i32, i32, i32
  }
  func.func @transform_1(%arg0: i32, %arg1: i32) -> (i32, i32, i32) {
    %c0_i32 = arith.constant 0 : i32
    %c0_i32_0 = arith.constant 0 : i32
    return %arg0, %arg1, %c0_i32 : i32, i32, i32
  }
  func.func @transform_2(%arg0: i32, %arg1: i32) -> (i32, i32, i32) {
    %c0_i32 = arith.constant 0 : i32
    %c0_i32_0 = arith.constant 0 : i32
    %c0_i32_1 = arith.constant 0 : i32
    return %arg0, %c0_i32, %c0_i32_0 : i32, i32, i32
  }
}

</mosaic_0001>

<llo_original>
// kernel: tpu_custom_call.1
$region0: #{tpu_custom_call.1}
  #allocation0 [shape = 'u32[]', space=smem, size = 0x4, offset = 0x4, fixed_abs, tag = 'smem constant byte address 0x4 - core index']
  #allocation1 [shape = 'u32[144,128]{1,0:T(1,128)}', space=vmem, size = 0x12000, scoped, tag = 'internal scratch']
  %s0 = inlined_call_operand.hbm [shape: f32[2,4,2,128], index: 0, kind: input, shape index: {}]
  %s1 = inlined_call_operand.hbm [shape: s32[2,2,128], index: 1, kind: input, shape index: {}]
  %s2 = inlined_call_operand.vmem [shape: f32[2,4,3], index: 2, kind: output, shape index: {}]
  %s3 = sld [smem:[#allocation0]]
  $region53: #{tpu_custom_call.1} parent=0
    _
  %s5 = ssub.s32 1, %s3
  %s6 = scalar_select 0, %s5, %s3
  $region1: #{tpu_custom_call.1} parent=0
    #allocation2 [shape = 'u8[8192]{0}', space=vmem, size = 0x2000, scoped, tag = 'input window, operand 0']
    #allocation3 [shape = 's32[2]{0}', space=sflag, size = 0x8, scoped, tag = 'scoped memory for tpu_custom_call.1']
    #allocation4 [shape = 'u8[2048]{0}', space=vmem, size = 0x800, scoped, tag = 'input window, operand 1']
    #allocation5 [shape = 's32[2]{0}', space=sflag, size = 0x8, scoped, tag = 'scoped memory for tpu_custom_call.1']
    %7 = vsyncpa [#allocation3], 0
    %s8 = scalar_lea.sflag [#allocation3], 1
    %9 = vsyncpa %s8, 0
    %10 = vsyncpa [#allocation5], 0
    %s11 = scalar_lea.sflag [#allocation5], 1
    %12 = vsyncpa %s11, 0
    loop: start=0, step=1, limit=4
    $region2: #{tpu_custom_call.1} parent=1 // loop_pre_header
      _
    $region3: #{tpu_custom_call.1} parent=1 // loop_header
      %s14 = sphi 0, %s18
      %p15 = scmp.ge.s32.totalorder %s14, 4
      %s21 = sphi 0, %s33
      %s22 = sphi 0, %s29
      %s23 = sphi 0, %s21
      %s24 = sphi 0, %s22
      %s25 = sphi 0, %s23
      %s26 = sphi 0, %s24
      %s38 = sphi 0, %s40
      %s41 = sphi 0, %s38
      %s42 = sphi 0, %s41
      %s58 = sphi 0, %s42
      %s66 = sphi 0, %s68
      %s69 = sphi 0, %s66
      %s70 = sphi 0, %s69
      %s86 = sphi 0, %s70
      %s92 = sphi 0, %s94
      %s95 = sphi 0, %s92
      %s96 = sphi 0, %s95
      %s112 = sphi 0, %s96
    $region4: #{tpu_custom_call.1} parent=1 // loop_header_branch
      %17 = sbr.rel (%p15) target = $region8
    $region5: #{tpu_custom_call.1} parent=1 // loop_body
      %s19 = ssub.s32 %s14, 1
      %s20 = ssub.s32 %s14, 2
      %s27 = sadd.s32 1, %s22
      %p28 = scmp.ge.s32.totalorder %s27, 1
      %s29 = scalar_select %p28, 0, %s27
      %s30 = sadd.s32 1, %s21
      %s31 = scalar_select %p28, %s30, %s21
      %p32 = scmp.ge.s32.totalorder %s31, 2
      %s33 = scalar_select %p32, 0, %s31
      %s34 = ssub.s32 %s21, %s33
      %s35 = ssub.s32 %s22, %s29
      %s36 = sor.u32 %s34, %s35
      %p37 = scmp.eq.s32.totalorder %s36, 0
      %s39 = sadd.s32 %s38, 1
      %s40 = scalar_select %p37, %s38, %s39
      %p43 = pneg %p37
      %p44 = scmp.eq.s32.totalorder %s14, 1
      %p45 = por %p43, %p44
      %p46 = scmp.ne.s32.totalorder %s38, %s41
      %p47 = scmp.eq.s32.totalorder %s14, 0
      %p48 = por %p46, %p47
      %p49 = scmp.ne.s32.totalorder %s38, %s41
      %p50 = scmp.eq.s32.totalorder %s19, 1
      %p51 = por %p49, %p50
      %p52 = scmp.ne.s32.totalorder %s41, %s42
      %p53 = scmp.eq.s32.totalorder %s19, 0
      %p54 = por %p52, %p53
      %p55 = scmp.ne.s32.totalorder %s41, %s42
      %p56 = scmp.eq.s32.totalorder %s20, 1
      %p57 = por %p55, %p56
      %p59 = scmp.ne.s32.totalorder %s42, %s58
      %p60 = scmp.eq.s32.totalorder %s20, 0
      %p61 = por %p59, %p60
      %s62 = ssub.s32 %s21, %s33
      %s63 = ssub.s32 %s22, %s29
      %s64 = sor.u32 %s62, %s63
      %p65 = scmp.eq.s32.totalorder %s64, 0
      %s67 = sadd.s32 %s66, 1
      %s68 = scalar_select %p65, %s66, %s67
      %p71 = pneg %p65
      %p72 = scmp.eq.s32.totalorder %s14, 1
      %p73 = por %p71, %p72
      %p74 = scmp.ne.s32.totalorder %s66, %s69
      %p75 = scmp.eq.s32.totalorder %s14, 0
      %p76 = por %p74, %p75
      %p77 = scmp.ne.s32.totalorder %s66, %s69
      %p78 = scmp.eq.s32.totalorder %s19, 1
      %p79 = por %p77, %p78
      %p80 = scmp.ne.s32.totalorder %s69, %s70
      %p81 = scmp.eq.s32.totalorder %s19, 0
      %p82 = por %p80, %p81
      %p83 = scmp.ne.s32.totalorder %s69, %s70
      %p84 = scmp.eq.s32.totalorder %s20, 1
      %p85 = por %p83, %p84
      %p87 = scmp.ne.s32.totalorder %s70, %s86
      %p88 = scmp.eq.s32.totalorder %s20, 0
      %p89 = por %p87, %p88
      %s90 = ssub.s32 %s21, %s33
      %p91 = scmp.eq.s32.totalorder %s90, 0
      %s93 = sadd.s32 %s92, 1
      %s94 = scalar_select %p91, %s92, %s93
      %p97 = pneg %p91
      %p98 = scmp.eq.s32.totalorder %s14, 1
      %p99 = por %p97, %p98
      %p100 = scmp.ne.s32.totalorder %s92, %s95
      %p101 = scmp.eq.s32.totalorder %s14, 0
      %p102 = por %p100, %p101
      %p103 = scmp.ne.s32.totalorder %s92, %s95
      %p104 = scmp.eq.s32.totalorder %s19, 1
      %p105 = por %p103, %p104
      %p106 = scmp.ne.s32.totalorder %s95, %s96
      %p107 = scmp.eq.s32.totalorder %s19, 0
      %p108 = por %p106, %p107
      %p109 = scmp.ne.s32.totalorder %s95, %s96
      %p110 = scmp.eq.s32.totalorder %s20, 1
      %p111 = por %p109, %p110
      %p113 = scmp.ne.s32.totalorder %s96, %s112
      %p114 = scmp.eq.s32.totalorder %s20, 0
      %p115 = por %p113, %p114
      %p116 = scmp.le.s32.totalorder 1, %s14
      %p117 = scmp.lt.s32.totalorder %s14, 3
      %p118 = pnand %p116, %p117
      %p119 = pneg %p118
      // Predicated region
      $region9: #{tpu_custom_call.1} parent=5 // pred_check
        _
      $region10: #{tpu_custom_call.1} parent=5 // pred_check_branch
        %121 = sbr.rel (%p118) target = $region12
      $region11: #{tpu_custom_call.1} parent=5 // pred_region
        %s122 = ssub.s32 %s14, 1
      $region12: #{tpu_custom_call.1} parent=5 // pred_fallthru
        _
      %p123 = scmp.lt.s32.totalorder %s14, 2
      // Predicated region
      $region13: #{tpu_custom_call.1} parent=5 // pred_check
        %p124 = pneg %p123
      $region14: #{tpu_custom_call.1} parent=5 // pred_check_branch
        %126 = sbr.rel (%p124) target = $region16
      $region15: #{tpu_custom_call.1} parent=5 // pred_region
        // Predicated region
        $region17: #{tpu_custom_call.1} parent=15 // pred_check
          %p127 = pneg %p48
        $region18: #{tpu_custom_call.1} parent=15 // pred_check_branch
          %129 = sbr.rel (%p127) target = $region20
        $region19: #{tpu_custom_call.1} parent=15 // pred_region
          %s130 = sand.u32 %s38, 1
          %s131 = scalar_lea.sflag [#allocation3], %s130
          %s132 = sand.u32 %s38, 1
          %s133 = smul.addr %s132, 8
          %s134 = scalar_lea.vmem [#allocation2], %s133
          %s136 = ssub.s32 128, 128
          %137 = vsyncadd %s131, %s136
          %s138 = smul.addr %s21, 4
          %s139 = sadd.s32 %s22, %s138
          %s140 = smul.addr %s139, 32
          %s141 = scalar_lea.hbm %s0, %s140
          %s142 = sshll.u32 %s134, 4
          %s143 = int_to_ptr.vmem [resolvable:$true] %s142
          %148 = dma.hbm_to_vmem [thread:$0]  %s141, 128, %s143, %s131, 32, 32, 2
        $region20: #{tpu_custom_call.1} parent=15 // pred_fallthru
          _
        // Predicated region
        $region21: #{tpu_custom_call.1} parent=15 // pred_check
          %p149 = pneg %p76
        $region22: #{tpu_custom_call.1} parent=15 // pred_check_branch
          %151 = sbr.rel (%p149) target = $region24
        $region23: #{tpu_custom_call.1} parent=15 // pred_region
          %s152 = sand.u32 %s66, 1
          %s153 = scalar_lea.sflag [#allocation5], %s152
          %s154 = sand.u32 %s66, 1
          %s155 = smul.addr %s154, 2
          %s156 = scalar_lea.vmem [#allocation4], %s155
          %s158 = ssub.s32 32, 32
          %159 = vsyncadd %s153, %s158
          %s160 = sadd.s32 %s22, %s21
          %s161 = smul.addr %s160, 32
          %s162 = scalar_lea.hbm %s1, %s161
          %s164 = sshll.u32 %s156, 4
          %s165 = int_to_ptr.vmem [resolvable:$true] %s164
          %167 = dma.hbm_to_vmem [thread:$0]  %s162, 32, %s165, %s153
        $region24: #{tpu_custom_call.1} parent=15 // pred_fallthru
          _
      $region16: #{tpu_custom_call.1} parent=5 // pred_fallthru
        _
      %p168 = scmp.le.s32.totalorder 1, %s14
      %p169 = scmp.lt.s32.totalorder %s14, 3
      %p170 = pnand %p168, %p169
      %p171 = pneg %p170
      // Predicated region
      $region25: #{tpu_custom_call.1} parent=5 // pred_check
        _
      $region26: #{tpu_custom_call.1} parent=5 // pred_check_branch
        %173 = sbr.rel (%p170) target = $region28
      $region27: #{tpu_custom_call.1} parent=5 // pred_region
        %s174 = ssub.s32 %s14, 1
        %s175 = sand.u32 %s41, 1
        %s176 = scalar_lea.sflag [#allocation3], %s175
        %s177 = sand.u32 %s41, 1
        %s178 = smul.addr %s177, 8
        %s179 = scalar_lea.vmem [#allocation2], %s178
        // Predicated region
        $region29: #{tpu_custom_call.1} parent=27 // pred_check
          %p180 = pneg %p54
        $region30: #{tpu_custom_call.1} parent=27 // pred_check_branch
          %182 = sbr.rel (%p180) target = $region32
        $region31: #{tpu_custom_call.1} parent=27 // pred_region
          %183 = dma.done %s176, 128
        $region32: #{tpu_custom_call.1} parent=27 // pred_fallthru
          _
        %s184 = sand.u32 %s69, 1
        %s185 = scalar_lea.sflag [#allocation5], %s184
        %s186 = sand.u32 %s69, 1
        %s187 = smul.addr %s186, 2
        %s188 = scalar_lea.vmem [#allocation4], %s187
        // Predicated region
        $region33: #{tpu_custom_call.1} parent=27 // pred_check
          %p189 = pneg %p82
        $region34: #{tpu_custom_call.1} parent=27 // pred_check_branch
          %191 = sbr.rel (%p189) target = $region36
        $region35: #{tpu_custom_call.1} parent=27 // pred_region
          %192 = dma.done %s185, 32
        $region36: #{tpu_custom_call.1} parent=27 // pred_fallthru
          _
        %s193 = sand.u32 %s41, 1
        %s194 = scalar_lea.sflag [#allocation3], %s193
        %s195 = sand.u32 %s41, 1
        %s196 = smul.addr %s195, 8
        %s197 = scalar_lea.vmem [#allocation2], %s196
        %p198 = pneg %p54
        %p199 = pneg %p51
        %s200 = sand.u32 %s69, 1
        %s201 = scalar_lea.sflag [#allocation5], %s200
        %s202 = sand.u32 %s69, 1
        %s203 = smul.addr %s202, 2
        %s204 = scalar_lea.vmem [#allocation4], %s203
        %p205 = pneg %p82
        %p206 = pneg %p79
        %p207 = pneg %p108
        %p208 = pneg %p105
        %p209 = scmp.lt.s32.totalorder %s23, 1
        %s210 = scalar_select %p209, %s23, 1
        %s211 = smul.addr %s210, 4
        %s212 = scalar_lea.vmem %s2, %s211
        %p213 = scmp.lt.s32.totalorder %s23, 1
        %s214 = scalar_select %p213, %s23, 1
        %s215 = smul.addr %s214, 4
        %s216 = scalar_lea.vmem %s2, %s215
        %v217 = vld [vmem:[%s179] sm:$0x3]
        %s218 = scalar_lea.vmem %s179, 2 [#allocation2]
        %v219 = vld [vmem:[%s218] sm:$0x3]
        %vm220 = vcmp.gt.f32.partialorder %v219, %v217
        %v221 = vsel %vm220, %v219, %v217
        %v222 = vsel %vm220, 1, 0
        %s223 = scalar_lea.vmem %s179, 4 [#allocation2]
        %v224 = vld [vmem:[%s223] sm:$0x3]
        %vm225 = vcmp.gt.f32.partialorder %v224, %v221
        %v226 = vsel %vm225, %v224, %v221
        %v227 = vsel %vm225, 2, %v222
        %s228 = scalar_lea.vmem %s179, 6 [#allocation2]
        %v229 = vld [vmem:[%s228] sm:$0x3]
        %vm230 = vcmp.gt.f32.partialorder %v229, %v226
        %v231 = vsel %vm230, 3, %v227
        %v232 = vld [vmem:[%s188] sm:$0x3]
        %vm233 = vcmp.eq.s32.totalorder %v231, %v232
        %vm234 = vcmp.eq.s32.totalorder %v232, 0
        %v235 = vsel %vm234, 1, 0
        %v236 = vcvt.s32.f32 %v235
        %vm237 = vcmp.eq.s32.totalorder %v231, 0
        %v238 = vsel %vm237, 1, 0
        %v239 = vcvt.s32.f32 %v238
        %v240 = vsel %vm233, %v236, 0.0
        %vm241 = vcmask 1041408
        %v242 = vsel %vm241, %v240, 0.0
        %243 = vadd.xlane.f32.xlu0 %v242
        %v244 = vpop.xlane.xlu0 %243
        %v245 = vsel %vm241, %v244, 0.0
        %v246 = vrot.slane %v245, 4
        %v247 = vadd.f32 %v245, %v246
        %v248 = vrot.slane %v247, 2
        %v249 = vadd.f32 %v247, %v248
        %v250 = vrot.slane %v249, 1
        %v251 = vadd.f32 %v249, %v250
        %v252 = vsel %vm241, %v239, 0.0
        %253 = vadd.xlane.f32.xlu0 %v252
        %v254 = vpop.xlane.xlu0 %253
        %v255 = vsel %vm241, %v254, 0.0
        %v256 = vrot.slane %v255, 4
        %v257 = vadd.f32 %v255, %v256
        %v258 = vrot.slane %v257, 2
        %v259 = vadd.f32 %v257, %v258
        %v260 = vrot.slane %v259, 1
        %v261 = vadd.f32 %v259, %v260
        %v262 = vsel %vm241, %v236, 0.0
        %263 = vadd.xlane.f32.xlu0 %v262
        %v264 = vpop.xlane.xlu0 %263
        %v265 = vsel %vm241, %v264, 0.0
        %v266 = vrot.slane %v265, 4
        %v267 = vadd.f32 %v265, %v266
        %v268 = vrot.slane %v267, 2
        %v269 = vadd.f32 %v267, %v268
        %v270 = vrot.slane %v269, 1
        %v271 = vadd.f32 %v269, %v270
        %vm272 = vcmask 7168
        %v273 = vsel %vm272, %v251, %v261
        %vm274 = vcmask 15360
        %v275 = vsel %vm274, %v273, %v271
        %vm276 = vcmp.eq.s32.totalorder %v232, 1
        %v277 = vsel %vm276, 1, 0
        %v278 = vcvt.s32.f32 %v277
        %vm279 = vcmp.eq.s32.totalorder %v231, 1
        %v280 = vsel %vm279, 1, 0
        %v281 = vcvt.s32.f32 %v280
        %v282 = vsel %vm233, %v278, 0.0
        %v283 = vsel %vm241, %v282, 0.0
        %284 = vadd.xlane.f32.xlu0 %v283
        %v285 = vpop.xlane.xlu0 %284
        %v286 = vsel %vm241, %v285, 0.0
        %v287 = vrot.slane %v286, 4
        %v288 = vadd.f32 %v286, %v287
        %v289 = vrot.slane %v288, 2
        %v290 = vadd.f32 %v288, %v289
        %v291 = vrot.slane %v290, 1
        %v292 = vadd.f32 %v290, %v291
        %v293 = vsel %vm241, %v281, 0.0
        %294 = vadd.xlane.f32.xlu0 %v293
        %v295 = vpop.xlane.xlu0 %294
        %v296 = vsel %vm241, %v295, 0.0
        %v297 = vrot.slane %v296, 4
        %v298 = vadd.f32 %v296, %v297
        %v299 = vrot.slane %v298, 2
        %v300 = vadd.f32 %v298, %v299
        %v301 = vrot.slane %v300, 1
        %v302 = vadd.f32 %v300, %v301
        %v303 = vsel %vm241, %v278, 0.0
        %304 = vadd.xlane.f32.xlu0 %v303
        %v305 = vpop.xlane.xlu0 %304
        %v306 = vsel %vm241, %v305, 0.0
        %v307 = vrot.slane %v306, 4
        %v308 = vadd.f32 %v306, %v307
        %v309 = vrot.slane %v308, 2
        %v310 = vadd.f32 %v308, %v309
        %v311 = vrot.slane %v310, 1
        %v312 = vadd.f32 %v310, %v311
        %v313 = vsel %vm272, %v292, %v302
        %v314 = vsel %vm274, %v313, %v312
        %vm315 = vcmp.eq.s32.totalorder %v232, 2
        %v316 = vsel %vm315, 1, 0
        %v317 = vcvt.s32.f32 %v316
        %vm318 = vcmp.eq.s32.totalorder %v231, 2
        %v319 = vsel %vm318, 1, 0
        %v320 = vcvt.s32.f32 %v319
        %v321 = vsel %vm233, %v317, 0.0
        %v322 = vsel %vm241, %v321, 0.0
        %323 = vadd.xlane.f32.xlu0 %v322
        %v324 = vpop.xlane.xlu0 %323
        %v325 = vsel %vm241, %v324, 0.0
        %v326 = vrot.slane %v325, 4
        %v327 = vadd.f32 %v325, %v326
        %v328 = vrot.slane %v327, 2
        %v329 = vadd.f32 %v327, %v328
        %v330 = vrot.slane %v329, 1
        %v331 = vadd.f32 %v329, %v330
        %v332 = vsel %vm241, %v320, 0.0
        %333 = vadd.xlane.f32.xlu0 %v332
        %v334 = vpop.xlane.xlu0 %333
        %v335 = vsel %vm241, %v334, 0.0
        %v336 = vrot.slane %v335, 4
        %v337 = vadd.f32 %v335, %v336
        %v338 = vrot.slane %v337, 2
        %v339 = vadd.f32 %v337, %v338
        %v340 = vrot.slane %v339, 1
        %v341 = vadd.f32 %v339, %v340
        %v342 = vsel %vm241, %v317, 0.0
        %343 = vadd.xlane.f32.xlu0 %v342
        %v344 = vpop.xlane.xlu0 %343
        %v345 = vsel %vm241, %v344, 0.0
        %v346 = vrot.slane %v345, 4
        %v347 = vadd.f32 %v345, %v346
        %v348 = vrot.slane %v347, 2
        %v349 = vadd.f32 %v347, %v348
        %v350 = vrot.slane %v349, 1
        %v351 = vadd.f32 %v349, %v350
        %v352 = vsel %vm272, %v331, %v341
        %v353 = vsel %vm274, %v352, %v351
        %vm354 = vcmp.eq.s32.totalorder %v232, 3
        %v355 = vsel %vm354, 1, 0
        %v356 = vcvt.s32.f32 %v355
        %vm357 = vcmp.eq.s32.totalorder %v231, 3
        %v358 = vsel %vm357, 1, 0
        %v359 = vcvt.s32.f32 %v358
        %v360 = vsel %vm233, %v356, 0.0
        %v361 = vsel %vm241, %v360, 0.0
        %362 = vadd.xlane.f32.xlu0 %v361
        %v363 = vpop.xlane.xlu0 %362
        %v364 = vsel %vm241, %v363, 0.0
        %v365 = vrot.slane %v364, 4
        %v366 = vadd.f32 %v364, %v365
        %v367 = vrot.slane %v366, 2
        %v368 = vadd.f32 %v366, %v367
        %v369 = vrot.slane %v368, 1
        %v370 = vadd.f32 %v368, %v369
        %v371 = vsel %vm241, %v359, 0.0
        %372 = vadd.xlane.f32.xlu0 %v371
        %v373 = vpop.xlane.xlu0 %372
        %v374 = vsel %vm241, %v373, 0.0
        %v375 = vrot.slane %v374, 4
        %v376 = vadd.f32 %v374, %v375
        %v377 = vrot.slane %v376, 2
        %v378 = vadd.f32 %v376, %v377
        %v379 = vrot.slane %v378, 1
        %v380 = vadd.f32 %v378, %v379
        %v381 = vsel %vm241, %v356, 0.0
        %382 = vadd.xlane.f32.xlu0 %v381
        %v383 = vpop.xlane.xlu0 %382
        %v384 = vsel %vm241, %v383, 0.0
        %v385 = vrot.slane %v384, 4
        %v386 = vadd.f32 %v384, %v385
        %v387 = vrot.slane %v386, 2
        %v388 = vadd.f32 %v386, %v387
        %v389 = vrot.slane %v388, 1
        %v390 = vadd.f32 %v388, %v389
        %v391 = vsel %vm272, %v370, %v380
        %v392 = vsel %vm274, %v391, %v390
        %v394 = vrot.slane %v314, 7
        %v397 = vrot.slane %v353, 6
        %v400 = vrot.slane %v392, 5
        %vm402 = vcmask 1040384
        %v403 = vsel %vm402, %v275, %v394
        %v404 = vsel %vm241, %v403, %v397
        %vm405 = vcmask 1042432
        %v406 = vsel %vm405, %v404, %v400
        %p407 = scmp.eq.s32.totalorder %s24, 0
        // Predicated region
        $region37: #{tpu_custom_call.1} parent=27 // pred_check
          %p408 = pneg %p407
        $region38: #{tpu_custom_call.1} parent=27 // pred_check_branch
          %410 = sbr.rel (%p408) target = $region40
        $region39: #{tpu_custom_call.1} parent=27 // pred_region
          %vm411 = vcmask 19456
          %412 = vst.msk [vmem:[%s216] sm:$0xf] %vm411, 0.0
        $region40: #{tpu_custom_call.1} parent=27 // pred_fallthru
          _
        %v413 = vld [vmem:[%s216] sm:$0xf]
        %v414 = vadd.f32 %v413, %v406
        %vm415 = vcmask 19456
        %416 = vst.msk [vmem:[%s216] sm:$0xf] %vm415, %v414
        %p417 = scmp.lt.s32.totalorder %s23, 1
        %s418 = scalar_select %p417, %s23, 1
        %s419 = smul.addr %s418, 4
        %s420 = scalar_lea.vmem %s2, %s419
        // Predicated region
        $region41: #{tpu_custom_call.1} parent=27 // pred_check
          %p421 = pneg %p105
        $region42: #{tpu_custom_call.1} parent=27 // pred_check_branch
          %423 = sbr.rel (%p421) target = $region44
        $region43: #{tpu_custom_call.1} parent=27 // pred_region
          _
        $region44: #{tpu_custom_call.1} parent=27 // pred_fallthru
          _
      $region28: #{tpu_custom_call.1} parent=5 // pred_fallthru
        _
      %p424 = scmp.le.s32.totalorder 2, %s14
      // Predicated region
      $region45: #{tpu_custom_call.1} parent=5 // pred_check
        %p425 = pneg %p424
      $region46: #{tpu_custom_call.1} parent=5 // pred_check_branch
        %427 = sbr.rel (%p425) target = $region48
      $region47: #{tpu_custom_call.1} parent=5 // pred_region
        %s428 = ssub.s32 %s14, 2
        // Predicated region
        $region49: #{tpu_custom_call.1} parent=47 // pred_check
          %p429 = pneg %p111
        $region50: #{tpu_custom_call.1} parent=47 // pred_check_branch
          %431 = sbr.rel (%p429) target = $region52
        $region51: #{tpu_custom_call.1} parent=47 // pred_region
          %p432 = scmp.lt.s32.totalorder %s25, 1
          %s433 = scalar_select %p432, %s25, 1
          %s434 = smul.addr %s433, 4
          %s435 = scalar_lea.vmem %s2, %s434
        $region52: #{tpu_custom_call.1} parent=47 // pred_fallthru
          _
      $region48: #{tpu_custom_call.1} parent=5 // pred_fallthru
        _
    $region6: #{tpu_custom_call.1} parent=1 // loop_footer
      %s18 = sadd.s32 1, %s14
    $region7: #{tpu_custom_call.1} parent=1 // loop_footer_branch
      %13 = sbr.rel target = $region3
    $region8: #{tpu_custom_call.1} parent=1 // loop_exit
      _
    %436 = vsyncpa [#allocation3], 1
    %s437 = scalar_lea.sflag [#allocation3], 1
    %438 = vsyncpa %s437, 1
    %439 = vsyncpa [#allocation5], 1
    %s440 = scalar_lea.sflag [#allocation5], 1
    %441 = vsyncpa %s440, 1

</llo_original>
